<compile_context>
chip_gen: v6e
topology: v6e:2x2x1
jax: 0.10.0
libtpu: 0.0.40
codegen_flags: <defaults>
</compile_context>

<pallas_src>
import functools

import jax
import jax.numpy as jnp
from jax.experimental import pallas as pl
from jax.experimental.pallas import tpu as pltpu


def _round_up(x, m):
    return ((x + m - 1) // m) * m


def _multimodal_kernel(x_ref, attn_ref, wcat_ref, wf_ref, bf_ref, o_ref):
    # Single fused projection of [embed2|rnn|cnn] into the multimodal space.
    h = jnp.dot(x_ref[...], wcat_ref[...], preferred_element_type=jnp.float32)
    # Attention is added post-projection (already M-wide); f32 VPU add.
    fused = h + attn_ref[...]
    # Fusion linear: the 2/3 pre-tanh scale and all projection biases are
    # already folded into wf / bf by the wrapper.
    f = jnp.dot(fused.astype(wf_ref.dtype), wf_ref[...],
                preferred_element_type=jnp.float32) + bf_ref[...]
    o_ref[...] = 1.7159 * jnp.tanh(f)


@functools.partial(jax.jit, static_argnames=("batch_tile", "compute_dtype"))
def multimodal_layer(embed2, rnn, attention, cnn, params, *,
                     batch_tile=256, compute_dtype=jnp.bfloat16):
    """Pallas forward of MultiModalLayer.

    embed2:    [B, E], rnn: [B, R], cnn: [B, C]
    attention: [B, M]   (added post-projection, so it must already be M-wide)
    params: w_embed2 [E,M], b_embed2 [1,M], w_rnn [R,M], b_rnn [1,M],
            w_cnn [C,M], b_cnn [1,M], w_fusion [M,O], b_fusion [1,O]
    returns:   [B, O] float32
    """
    M, O = params["w_fusion"].shape
    B = embed2.shape[0]
    if attention.shape != (B, M):
        raise ValueError(
            f"attention must be [B, M]=({B},{M}), got {attention.shape}")

    # ---- host-side fusion / constant folding ------------------------------
    x_cat = jnp.concatenate([embed2, rnn, cnn], axis=-1)                   # [B, K]
    w_cat = jnp.concatenate(
        [params["w_embed2"], params["w_rnn"], params["w_cnn"]], axis=0)    # [K, M]
    b_sum = params["b_embed2"] + params["b_rnn"] + params["b_cnn"]         # [1, M]
    # Fold the summed projection bias and the 2/3 pre-tanh scale into fusion.
    w_f = (2.0 / 3.0) * params["w_fusion"]                                 # [M, O]
    b_f = (2.0 / 3.0) * (params["b_fusion"] + b_sum @ params["w_fusion"])  # [1, O]

    # ---- pad to TPU-friendly shapes (lanes -> 128, batch -> tile multiple) -
    K = x_cat.shape[1]
    Kp, Mp, Op = _round_up(K, 128), _round_up(M, 128), _round_up(O, 128)
    TB = min(batch_tile, _round_up(B, 8))     # batch tile, multiple of 8 sublanes
    Bp = _round_up(B, TB)

    def pad2(a, rows, cols):
        return jnp.pad(a, ((0, rows - a.shape[0]), (0, cols - a.shape[1])))

    x_p = pad2(x_cat, Bp, Kp).astype(compute_dtype)
    a_p = pad2(attention, Bp, Mp).astype(jnp.float32)
    wc_p = pad2(w_cat, Kp, Mp).astype(compute_dtype)
    wf_p = pad2(w_f, Mp, Op).astype(compute_dtype)
    bf_p = pad2(b_f, 1, Op).astype(jnp.float32)

    grid = (Bp // TB,)
    nbytes = lambda a: a.size * a.dtype.itemsize
    cost = pl.CostEstimate(
        flops=2 * Bp * (Kp * Mp + Mp * Op),
        transcendentals=Bp * Op,
        bytes_accessed=(nbytes(x_p) + nbytes(a_p) + nbytes(wc_p)
                        + nbytes(wf_p) + nbytes(bf_p) + Bp * Op * 4),
    )

    # VMEM budget at TB=256: activations (bf16/f32) + resident weights are well
    # under the v7x 32 MiB default-scoped limit, so no vmem_limit_bytes needed.
    out = pl.pallas_call(
        _multimodal_kernel,
        out_shape=jax.ShapeDtypeStruct((Bp, Op), jnp.float32),
        grid=grid,
        in_specs=[
            pl.BlockSpec((TB, Kp), lambda i: (i, 0)),   # x_cat: batch-tiled
            pl.BlockSpec((TB, Mp), lambda i: (i, 0)),   # attention: batch-tiled
            pl.BlockSpec((Kp, Mp), lambda i: (0, 0)),   # stacked proj weight: resident
            pl.BlockSpec((Mp, Op), lambda i: (0, 0)),   # fusion weight: resident
            pl.BlockSpec((1, Op), lambda i: (0, 0)),    # folded fusion bias: resident
        ],
        out_specs=pl.BlockSpec((TB, Op), lambda i: (i, 0)),
        compiler_params=pltpu.CompilerParams(
            dimension_semantics=("parallel",),          # shard batch over TCs (v7x)
        ),
        cost_estimate=cost,
    )(x_p, a_p, wc_p, wf_p, bf_p)

    return out[:B, :O]


def init_params(key, embed2_features, rnn_features, cnn_features,
                multimodal_features, out_features):
    """Deterministic init mimicking torch.nn.Linear (uniform +-1/sqrt(fan_in))."""
    ks = jax.random.split(key, 8)

    def linear(kw, kb, fan_in, fan_out):
        bound = 1.0 / jnp.sqrt(fan_in)
        # stored as [in, out] (transpose of torch's [out, in]) for x @ W
        w = jax.random.uniform(kw, (fan_in, fan_out), jnp.float32, -bound, bound)
        b = jax.random.uniform(kb, (1, fan_out), jnp.float32, -bound, bound)
        return w, b

    w_e, b_e = linear(ks[0], ks[1], embed2_features, multimodal_features)
    w_r, b_r = linear(ks[2], ks[3], rnn_features, multimodal_features)
    w_c, b_c = linear(ks[4], ks[5], cnn_features, multimodal_features)
    w_f, b_f = linear(ks[6], ks[7], multimodal_features, out_features)
    return {
        "w_embed2": w_e, "b_embed2": b_e,
        "w_rnn": w_r, "b_rnn": b_r,
        "w_cnn": w_c, "b_cnn": b_c,
        "w_fusion": w_f, "b_fusion": b_f,
    }


def _reference(embed2, rnn, attention, cnn, p):
    w = embed2 @ p["w_embed2"] + p["b_embed2"]
    r = rnn @ p["w_rnn"] + p["b_rnn"]
    v = cnn @ p["w_cnn"] + p["b_cnn"]
    f = (w + r + v + attention) @ p["w_fusion"] + p["b_fusion"]
    return 1.7159 * jnp.tanh((2.0 / 3.0) * f)


if __name__ == "__main__":
    # Small shapes consistent with the module's forward.
    B = 8
    embed2_features = 32
    rnn_features = 16
    cnn_features = 24
    multimodal_features = 64
    out_features = 32

    key = jax.random.PRNGKey(0)
    k_e, k_r, k_a, k_c, k_p = jax.random.split(key, 5)

    embed2 = jax.random.normal(k_e, (B, embed2_features), jnp.float32)
    rnn = jax.random.normal(k_r, (B, rnn_features), jnp.float32)
    attention = jax.random.normal(k_a, (B, multimodal_features), jnp.float32)
    cnn = jax.random.normal(k_c, (B, cnn_features), jnp.float32)

    params = init_params(k_p, embed2_features, rnn_features, cnn_features,
                         multimodal_features, out_features)

    out = multimodal_layer(embed2, rnn, attention, cnn, params)
    out = jax.block_until_ready(out)

    ref = _reference(embed2, rnn, attention, cnn, params)
    assert out.shape == (B, out_features)
    # bf16 MXU operands (f32 accumulation) -> loosened tolerance vs. f32 reference.
    assert jnp.allclose(out, ref, atol=5e-2, rtol=5e-2), \
        float(jnp.max(jnp.abs(out - ref)))

    print("KERNEL_OK")
</pallas_src>

<mosaic_0001>
module attributes {stable_mosaic.version = 11 : i64} {
  func.func @_multimodal_kernel(%arg0: i32, %arg1: memref<8x128xbf16, #tpu.memory_space<vmem>>, %arg2: memref<8x128xf32, #tpu.memory_space<vmem>>, %arg3: memref<128x128xbf16, #tpu.memory_space<vmem>>, %arg4: memref<128x128xbf16, #tpu.memory_space<vmem>>, %arg5: memref<1x128xf32, #tpu.memory_space<vmem>>, %arg6: memref<8x128xf32, #tpu.memory_space<vmem>>) attributes {dimension_semantics = [#tpu.dimension_semantics<parallel>], iteration_bounds = array<i64: 1>, scalar_prefetch = 0 : i64, scratch_operands = 0 : i64, tpu.core_type = #tpu.core_type<tc>, window_params = [{transform_indices = @transform_0, window_bounds = array<i64: 8, 128>}, {transform_indices = @transform_1, window_bounds = array<i64: 8, 128>}, {pipeline_mode = #tpu.pipeline_mode<synchronous>, transform_indices = @transform_2, window_bounds = array<i64: 128, 128>}, {pipeline_mode = #tpu.pipeline_mode<synchronous>, transform_indices = @transform_3, window_bounds = array<i64: 128, 128>}, {pipeline_mode = #tpu.pipeline_mode<synchronous>, transform_indices = @transform_4, window_bounds = array<i64: 1, 128>}, {transform_indices = @transform_5, window_bounds = array<i64: 8, 128>}]} {
    %c0 = arith.constant 0 : index
    %c0_0 = arith.constant 0 : index
    %0 = vector.load %arg1[%c0, %c0_0] : memref<8x128xbf16, #tpu.memory_space<vmem>>, vector<8x128xbf16>
    %c0_1 = arith.constant 0 : index
    %c0_2 = arith.constant 0 : index
    %1 = vector.load %arg3[%c0_1, %c0_2] : memref<128x128xbf16, #tpu.memory_space<vmem>>, vector<128x128xbf16>
    %cst = arith.constant dense<0.000000e+00> : vector<8x128xf32>
    %2 = tpu.matmul %0, %1, %cst {dimension_numbers = #tpu.dot_dimension_numbers<[1], [0], [0], [1], [0, 0, 1, 1], [], []>} : vector<8x128xbf16>, vector<128x128xbf16>, vector<8x128xf32> -> vector<8x128xf32>
    %c0_3 = arith.constant 0 : index
    %c0_4 = arith.constant 0 : index
    %3 = vector.load %arg2[%c0_3, %c0_4] : memref<8x128xf32, #tpu.memory_space<vmem>>, vector<8x128xf32>
    %4 = arith.addf %2, %3 : vector<8x128xf32>
    %5 = arith.truncf %4 : vector<8x128xf32> to vector<8x128xbf16>
    %c0_5 = arith.constant 0 : index
    %c0_6 = arith.constant 0 : index
    %6 = vector.load %arg4[%c0_5, %c0_6] : memref<128x128xbf16, #tpu.memory_space<vmem>>, vector<128x128xbf16>
    %cst_7 = arith.constant dense<0.000000e+00> : vector<8x128xf32>
    %7 = tpu.matmul %5, %6, %cst_7 {dimension_numbers = #tpu.dot_dimension_numbers<[1], [0], [0], [1], [0, 0, 1, 1], [], []>} : vector<8x128xbf16>, vector<128x128xbf16>, vector<8x128xf32> -> vector<8x128xf32>
    %c0_8 = arith.constant 0 : index
    %c0_9 = arith.constant 0 : index
    %8 = vector.load %arg5[%c0_8, %c0_9] : memref<1x128xf32, #tpu.memory_space<vmem>>, vector<1x128xf32>
    %9 = vector.broadcast %8 : vector<1x128xf32> to vector<8x128xf32>
    %10 = arith.addf %7, %9 : vector<8x128xf32>
    %11 = math.tanh %10 : vector<8x128xf32>
    %cst_10 = arith.constant 1.715900e+00 : f32
    %12 = vector.broadcast %cst_10 : f32 to vector<8x128xf32>
    %13 = arith.mulf %12, %11 : vector<8x128xf32>
    %c0_11 = arith.constant 0 : index
    %c0_12 = arith.constant 0 : index
    %14 = vector.load %arg6[%c0_11, %c0_12] : memref<8x128xf32, #tpu.memory_space<vmem>>, vector<8x128xf32>
    tpu.vector_store %arg6[%c0_11, %c0_12], %13 {strides = array<i32>} : memref<8x128xf32, #tpu.memory_space<vmem>>, vector<8x128xf32>,
    return
  }
  func.func @transform_0(%arg0: i32) -> (i32, i32) {
    %c0_i32 = arith.constant 0 : i32
    %c0_i32_0 = arith.constant 0 : i32
    return %arg0, %c0_i32 : i32, i32
  }
  func.func @transform_1(%arg0: i32) -> (i32, i32) {
    %c0_i32 = arith.constant 0 : i32
    %c0_i32_0 = arith.constant 0 : i32
    return %arg0, %c0_i32 : i32, i32
  }
  func.func @transform_2(%arg0: i32) -> (i32, i32) {
    %c0_i32 = arith.constant 0 : i32
    %c0_i32_0 = arith.constant 0 : i32
    %c0_i32_1 = arith.constant 0 : i32
    return %c0_i32, %c0_i32_0 : i32, i32
  }
  func.func @transform_3(%arg0: i32) -> (i32, i32) {
    %c0_i32 = arith.constant 0 : i32
    %c0_i32_0 = arith.constant 0 : i32
    %c0_i32_1 = arith.constant 0 : i32
    return %c0_i32, %c0_i32_0 : i32, i32
  }
  func.func @transform_4(%arg0: i32) -> (i32, i32) {
    %c0_i32 = arith.constant 0 : i32
    %c0_i32_0 = arith.constant 0 : i32
    %c0_i32_1 = arith.constant 0 : i32
    return %c0_i32, %c0_i32_0 : i32, i32
  }
  func.func @transform_5(%arg0: i32) -> (i32, i32) {
    %c0_i32 = arith.constant 0 : i32
    %c0_i32_0 = arith.constant 0 : i32
    return %arg0, %c0_i32 : i32, i32
  }
}

</mosaic_0001>

<llo_original>
// kernel: multimodal_layer.1
$region0: #{multimodal_layer.1}
  #allocation0 [shape = 'u32[]', space=smem, size = 0x4, offset = 0x4, fixed_abs, tag = 'smem constant byte address 0x4 - core index']
  #allocation1 [shape = 'u32[144,128]{1,0:T(1,128)}', space=vmem, size = 0x12000, scoped, tag = 'internal scratch']
  %s0 = inlined_call_operand.vmem [shape: bf16[8,128], index: 0, kind: input, shape index: {}]
  %s1 = inlined_call_operand.vmem [shape: f32[8,128], index: 1, kind: input, shape index: {}]
  %s2 = inlined_call_operand.vmem [shape: bf16[128,128], index: 2, kind: input, shape index: {}]
  %s3 = inlined_call_operand.vmem [shape: bf16[128,128], index: 3, kind: input, shape index: {}]
  %s4 = inlined_call_operand.vmem [shape: f32[1,128], index: 4, kind: input, shape index: {}]
  %s5 = inlined_call_operand.hbm [shape: f32[8,128], index: 5, kind: output, shape index: {}]
  %s6 = sld [smem:[#allocation0]]
  $region30: #{multimodal_layer.1} parent=0
    _
  %s8 = ssub.s32 1, %s6
  %s9 = scalar_select 0, %s8, %s6
  $region1: #{multimodal_layer.1} parent=0
    #allocation2 [shape = 'u8[4096]{0}', space=vmem, size = 0x1000, scoped, tag = 'output window, operand 0, single buffered']
    #allocation3 [shape = 's32[1]{0}', space=sflag, size = 0x4, scoped, tag = 'scoped memory for multimodal_layer.1']
    %10 = vsyncpa [#allocation3], 0
    // Predicated region
    $region2: #{multimodal_layer.1} parent=1 // pred_check
      _
    $region3: #{multimodal_layer.1} parent=1 // pred_check_branch
      %12 = sbr.rel (0) target = $region5
    $region4: #{multimodal_layer.1} parent=1 // pred_region
      _
    $region5: #{multimodal_layer.1} parent=1 // pred_fallthru
      _
    // Predicated region
    $region6: #{multimodal_layer.1} parent=1 // pred_check
      _
    $region7: #{multimodal_layer.1} parent=1 // pred_check_branch
      %14 = sbr.rel (0) target = $region9
    $region8: #{multimodal_layer.1} parent=1 // pred_region
      _
    $region9: #{multimodal_layer.1} parent=1 // pred_fallthru
      _
    // Predicated region
    $region10: #{multimodal_layer.1} parent=1 // pred_check
      _
    $region11: #{multimodal_layer.1} parent=1 // pred_check_branch
      %16 = sbr.rel (0) target = $region13
    $region12: #{multimodal_layer.1} parent=1 // pred_region
      _
    $region13: #{multimodal_layer.1} parent=1 // pred_fallthru
      _
    // Predicated region
    $region14: #{multimodal_layer.1} parent=1 // pred_check
      _
    $region15: #{multimodal_layer.1} parent=1 // pred_check_branch
      %18 = sbr.rel (0) target = $region17
    $region16: #{multimodal_layer.1} parent=1 // pred_region
      _
    $region17: #{multimodal_layer.1} parent=1 // pred_fallthru
      _
    // Predicated region
    $region18: #{multimodal_layer.1} parent=1 // pred_check
      _
    $region19: #{multimodal_layer.1} parent=1 // pred_check_branch
      %20 = sbr.rel (0) target = $region21
    $region20: #{multimodal_layer.1} parent=1 // pred_region
      _
    $region21: #{multimodal_layer.1} parent=1 // pred_fallthru
      _
    %v22 = vld [vmem:[%s0] sm:$0xf]
    %v23 = vld [vmem:[%s2] sm:$0xf]
    %v24 = vld [vmem:[%s2 + $0x4] sm:$0xf]
    %v25 = vld [vmem:[%s2 + $0x8] sm:$0xf]
    %v26 = vld [vmem:[%s2 + $0xc] sm:$0xf]
    %v27 = vld [vmem:[%s2 + $0x10] sm:$0xf]
    %v28 = vld [vmem:[%s2 + $0x14] sm:$0xf]
    %v29 = vld [vmem:[%s2 + $0x18] sm:$0xf]
    %v30 = vld [vmem:[%s2 + $0x1c] sm:$0xf]
    %v31 = vld [vmem:[%s2 + $0x20] sm:$0xf]
    %v32 = vld [vmem:[%s2 + $0x24] sm:$0xf]
    %v33 = vld [vmem:[%s2 + $0x28] sm:$0xf]
    %v34 = vld [vmem:[%s2 + $0x2c] sm:$0xf]
    %v35 = vld [vmem:[%s2 + $0x30] sm:$0xf]
    %v36 = vld [vmem:[%s2 + $0x34] sm:$0xf]
    %v37 = vld [vmem:[%s2 + $0x38] sm:$0xf]
    %v38 = vld [vmem:[%s2 + $0x3c] sm:$0xf]
    %v39 = vld [vmem:[%s1] sm:$0xff]
    %v56 = vunpack.c.l.b16 %v23
    %v57 = vunpack.c.l.b16 %v24
    %v58 = vunpack.c.l.b16 %v25
    %v59 = vunpack.c.l.b16 %v26
    %v60 = vunpack.c.l.b16 %v27
    %v61 = vunpack.c.l.b16 %v28
    %v62 = vunpack.c.l.b16 %v29
    %v63 = vunpack.c.l.b16 %v30
    %v64 = vunpack.c.l.b16 %v31
    %v65 = vunpack.c.l.b16 %v32
    %v66 = vunpack.c.l.b16 %v33
    %v67 = vunpack.c.l.b16 %v34
    %v68 = vunpack.c.l.b16 %v35
    %v69 = vunpack.c.l.b16 %v36
    %v70 = vunpack.c.l.b16 %v37
    %v71 = vunpack.c.l.b16 %v38
    %v72 = vpack.c.b16 %v57, %v56
    %v73 = vpack.c.b16 %v59, %v58
    %v74 = vpack.c.b16 %v61, %v60
    %v75 = vpack.c.b16 %v63, %v62
    %v76 = vpack.c.b16 %v65, %v64
    %v77 = vpack.c.b16 %v67, %v66
    %v78 = vpack.c.b16 %v69, %v68
    %v79 = vpack.c.b16 %v71, %v70
    %88 = vmatprep.subr.bf16.mxu0 0
    %89 = vmatpush1.bf16.msra.mxu0 %v79
    %90 = vmatprep.subr.bf16.mxu0 0
    %91 = vmatpush1.bf16.msra.mxu0 %v78
    %92 = vmatprep.subr.bf16.mxu0 0
    %93 = vmatpush1.bf16.msra.mxu0 %v77
    %94 = vmatprep.subr.bf16.mxu0 0
    %95 = vmatpush1.bf16.msra.mxu0 %v76
    %96 = vmatprep.subr.bf16.mxu0 0
    %97 = vmatpush1.bf16.msra.mxu0 %v75
    %98 = vmatprep.subr.bf16.mxu0 0
    %99 = vmatpush1.bf16.msra.mxu0 %v74
    %100 = vmatprep.subr.bf16.mxu0 0
    %101 = vmatpush1.bf16.msra.mxu0 %v73
    %102 = vmatprep.subr.bf16.mxu0 0
    %103 = vmatpush1.bf16.msra.mxu0 %v72
    %104 = vmatprep.subr.bf16.mxu0 0
    %105 = vmatpush2.bf16.msra.mxu0 0
    %106 = vmatprep.subr.bf16.mxu0 0
    %107 = vmatpush2.bf16.msra.mxu0 0
    %108 = vmatprep.subr.bf16.mxu0 0
    %109 = vmatpush2.bf16.msra.mxu0 0
    %110 = vmatprep.subr.bf16.mxu0 0
    %111 = vmatpush2.bf16.msra.mxu0 0
    %112 = vmatprep.subr.bf16.mxu0 0
    %113 = vmatpush2.bf16.msra.mxu0 0
    %114 = vmatprep.subr.bf16.mxu0 0
    %115 = vmatpush2.bf16.msra.mxu0 0
    %116 = vmatprep.subr.bf16.mxu0 0
    %117 = vmatpush2.bf16.msra.mxu0 0
    %118 = vmatprep.subr.bf16.mxu0 0
    %119 = vmatpush2.bf16.msra.mxu0 0
    %120 = vmatprep.mubr.bf16.mxu0 0
    %121 = vmatmul.mubr.bf16.gmra.mxu0 %v22
    %v122 = vpop.f32.mrf.mxu0
    %v123 = vadd.f32 %v39, %v122
    %v124 = vpop.f32.mrf.mxu0
    %v125 = vpop.f32.mrf.mxu0
    %v126 = vpop.f32.mrf.mxu0
    %127 = vdwg.mxu0
    %v128 = vpack.c.bf16 %v123, %v123
    %v129 = vld [vmem:[%s3] sm:$0xf]
    %v130 = vld [vmem:[%s3 + $0x4] sm:$0xf]
    %v131 = vld [vmem:[%s3 + $0x8] sm:$0xf]
    %v132 = vld [vmem:[%s3 + $0xc] sm:$0xf]
    %v133 = vld [vmem:[%s3 + $0x10] sm:$0xf]
    %v134 = vld [vmem:[%s3 + $0x14] sm:$0xf]
    %v135 = vld [vmem:[%s3 + $0x18] sm:$0xf]
    %v136 = vld [vmem:[%s3 + $0x1c] sm:$0xf]
    %v137 = vld [vmem:[%s3 + $0x20] sm:$0xf]
    %v138 = vld [vmem:[%s3 + $0x24] sm:$0xf]
    %v139 = vld [vmem:[%s3 + $0x28] sm:$0xf]
    %v140 = vld [vmem:[%s3 + $0x2c] sm:$0xf]
    %v141 = vld [vmem:[%s3 + $0x30] sm:$0xf]
    %v142 = vld [vmem:[%s3 + $0x34] sm:$0xf]
    %v143 = vld [vmem:[%s3 + $0x38] sm:$0xf]
    %v144 = vld [vmem:[%s3 + $0x3c] sm:$0xf]
    %v145 = vld [vmem:[%s4] sm:$0x1]
    %v147 = vlaneseq
    %v148 = vshrl.u32 %v147, 7
    %v149 = vsub.s32 0, %v148
    %v150 = vrot.slane %v145, %v149
    %v168 = vunpack.c.l.b16 %v129
    %v169 = vunpack.c.l.b16 %v130
    %v170 = vunpack.c.l.b16 %v131
    %v171 = vunpack.c.l.b16 %v132
    %v172 = vunpack.c.l.b16 %v133
    %v173 = vunpack.c.l.b16 %v134
    %v174 = vunpack.c.l.b16 %v135
    %v175 = vunpack.c.l.b16 %v136
    %v176 = vunpack.c.l.b16 %v137
    %v177 = vunpack.c.l.b16 %v138
    %v178 = vunpack.c.l.b16 %v139
    %v179 = vunpack.c.l.b16 %v140
    %v180 = vunpack.c.l.b16 %v141
    %v181 = vunpack.c.l.b16 %v142
    %v182 = vunpack.c.l.b16 %v143
    %v183 = vunpack.c.l.b16 %v144
    %v184 = vpack.c.b16 %v169, %v168
    %v185 = vpack.c.b16 %v171, %v170
    %v186 = vpack.c.b16 %v173, %v172
    %v187 = vpack.c.b16 %v175, %v174
    %v188 = vpack.c.b16 %v177, %v176
    %v189 = vpack.c.b16 %v179, %v178
    %v190 = vpack.c.b16 %v181, %v180
    %v191 = vpack.c.b16 %v183, %v182
    %200 = vmatprep.subr.bf16.mxu0 0
    %201 = vmatpush1.bf16.msra.mxu0 %v191
    %202 = vmatprep.subr.bf16.mxu0 0
    %203 = vmatpush1.bf16.msra.mxu0 %v190
    %204 = vmatprep.subr.bf16.mxu0 0
    %205 = vmatpush1.bf16.msra.mxu0 %v189
    %206 = vmatprep.subr.bf16.mxu0 0
    %207 = vmatpush1.bf16.msra.mxu0 %v188
    %208 = vmatprep.subr.bf16.mxu0 0
    %209 = vmatpush1.bf16.msra.mxu0 %v187
    %210 = vmatprep.subr.bf16.mxu0 0
    %211 = vmatpush1.bf16.msra.mxu0 %v186
    %212 = vmatprep.subr.bf16.mxu0 0
    %213 = vmatpush1.bf16.msra.mxu0 %v185
    %214 = vmatprep.subr.bf16.mxu0 0
    %215 = vmatpush1.bf16.msra.mxu0 %v184
    %216 = vmatprep.subr.bf16.mxu0 0
    %217 = vmatpush2.bf16.msra.mxu0 0
    %218 = vmatprep.subr.bf16.mxu0 0
    %219 = vmatpush2.bf16.msra.mxu0 0
    %220 = vmatprep.subr.bf16.mxu0 0
    %221 = vmatpush2.bf16.msra.mxu0 0
    %222 = vmatprep.subr.bf16.mxu0 0
    %223 = vmatpush2.bf16.msra.mxu0 0
    %224 = vmatprep.subr.bf16.mxu0 0
    %225 = vmatpush2.bf16.msra.mxu0 0
    %226 = vmatprep.subr.bf16.mxu0 0
    %227 = vmatpush2.bf16.msra.mxu0 0
    %228 = vmatprep.subr.bf16.mxu0 0
    %229 = vmatpush2.bf16.msra.mxu0 0
    %230 = vmatprep.subr.bf16.mxu0 0
    %231 = vmatpush2.bf16.msra.mxu0 0
    %232 = vmatprep.mubr.bf16.mxu0 0
    %233 = vmatmul.mubr.bf16.gmra.mxu0 %v128
    %v234 = vpop.f32.mrf.mxu0
    %v235 = vadd.f32 %v150, %v234
    %v236 = vpop.f32.mrf.mxu0
    %v237 = vpop.f32.mrf.mxu0
    %v238 = vpop.f32.mrf.mxu0
    %239 = vdwg.mxu0
    %v240 = vtanh.pop %v235
    %v241 = vmul.f32 %v240, 1.7159
    %242 = vst [vmem:[#allocation2] sm:$0xff] %v241
    // Predicated region
    $region22: #{multimodal_layer.1} parent=1 // pred_check
      _
    $region23: #{multimodal_layer.1} parent=1 // pred_check_branch
      %244 = sbr.rel (0) target = $region25
    $region24: #{multimodal_layer.1} parent=1 // pred_region
      %s246 = ssub.s32 128, 128
      %247 = vsyncadd [#allocation3], %s246
      %s249 = sshll.u32 [#allocation2], 4
      %s250 = int_to_ptr.vmem [resolvable:$true] %s249
      %252 = dma.vmem_to_hbm [thread:$0]  %s250, 128, %s5, [#allocation3]
    $region25: #{multimodal_layer.1} parent=1 // pred_fallthru
      _
    // Predicated region
    $region26: #{multimodal_layer.1} parent=1 // pred_check
      _
    $region27: #{multimodal_layer.1} parent=1 // pred_check_branch
      %254 = sbr.rel (0) target = $region29
    $region28: #{multimodal_layer.1} parent=1 // pred_region
      %255 = dma.done [#allocation3], 128
    $region29: #{multimodal_layer.1} parent=1 // pred_fallthru
      _
    %256 = vsyncpa [#allocation3], 1

</llo_original>
